<compile_context>
chip_gen: v5e
topology: v5e:2x2
jax: 0.10.0
libtpu: 0.0.40
codegen_flags: <defaults>
</compile_context>

<pallas_src>
import jax
import jax.numpy as jnp
from jax.experimental import pallas as pl
from jax.experimental.pallas import tpu as pltpu


def _round_up(x: int, m: int) -> int:
    return ((x + m - 1) // m) * m


# Batches with at least this many rows are split into >=2 grid steps so the
# "parallel" batch axis can be sharded across v7x's two TensorCores while each
# core still gets >=1K rows (amortizing the ~0.35us per-grid-step overhead).
_SPLIT_THRESHOLD = 2048


def _min_sublane(*dtypes) -> int:
    # Native sublane tile: 8 for 4-byte, 16 for 2-byte, 32 for 1-byte dtypes.
    return max([8] + [32 // jnp.dtype(d).itemsize for d in dtypes])


def _pick_tile(batch: int, block_b: int, min_tile: int):
    """Choose (batch tile, number of grid steps)."""
    if batch <= block_b and batch < _SPLIT_THRESHOLD:
        # Single full-array block: legal for any shape, minimal overhead.
        return batch, 1
    num_steps = max(pl.cdiv(batch, block_b), 2)
    if num_steps % 2:
        num_steps += 1        # even step count -> balanced across v7x's 2 TCs
    tile = _round_up(pl.cdiv(batch, num_steps), min_tile)
    return tile, pl.cdiv(batch, tile)


def prepare_params(params):
    """One-time re-layout of PyTorch nn.Linear params into kernel layout.

    Hoisted out of the per-call hot path: call once per parameter set.
    `params` uses PyTorch layout: ww (H, Dw), bw (H,), wg (H, Dg), bg (H,),
    wf (1, 2H), bf (1,).
    """
    hidden = params["ww"].shape[0]
    wf = jnp.asarray(params["wf"], jnp.float32).reshape(1, 2 * hidden)
    return {
        "wwt": jnp.asarray(params["ww"], jnp.float32).T,             # (Dw, H)
        "bw":  jnp.asarray(params["bw"], jnp.float32).reshape(1, hidden),
        "wfw": wf[:, :hidden],                                        # (1, H)
        "wgt": jnp.asarray(params["wg"], jnp.float32).T,              # (Dg, H)
        "bg":  jnp.asarray(params["bg"], jnp.float32).reshape(1, hidden),
        "wfg": wf[:, hidden:],                                        # (1, H)
        "bf":  jnp.asarray(params["bf"], jnp.float32).reshape(1),     # SMEM scalar
    }


def _fusion_kernel(w_ref, g_ref, wwt_ref, bw_ref, wfw_ref,
                   wgt_ref, bg_ref, wfg_ref, bf_ref, out_ref):
    # w_ref   : (tb, Dw)  weather features (streamed, any float dtype)
    # g_ref   : (tb, Dg)  grid features    (streamed)
    # wwt_ref : (Dw, H)   weather_fc weight^T     (VMEM resident, f32)
    # bw_ref  : (1, H)    weather_fc bias
    # wfw_ref : (1, H)    fusion_fc weight, weather half
    # wgt_ref : (Dg, H)   grid_fc weight^T
    # bg_ref  : (1, H)    grid_fc bias
    # wfg_ref : (1, H)    fusion_fc weight, grid half
    # bf_ref  : (1,)      fusion_fc bias (SMEM scalar)
    # out_ref : (tb, 1)   f32 output
    xw = w_ref[...].astype(jnp.float32)
    xg = g_ref[...].astype(jnp.float32)
    hw = jnp.maximum(
        jnp.dot(xw, wwt_ref[...], preferred_element_type=jnp.float32) + bw_ref[...],
        0.0)
    hg = jnp.maximum(
        jnp.dot(xg, wgt_ref[...], preferred_element_type=jnp.float32) + bg_ref[...],
        0.0)
    # Final 2H -> 1 projection: equivalent to concat([hw, hg], 1) @ wf^T + bf,
    # done as a VPU multiply + XLU lane reduce (no concat, no N=1 MXU matmul).
    acc = jnp.sum(hw * wfw_ref[...] + hg * wfg_ref[...], axis=-1, keepdims=True)
    out_ref[...] = (acc + bf_ref[0]).astype(out_ref.dtype)


def weather_impact_fusion(weather_feat, grid_feat, packed, *, block_b: int = 8192):
    """Forward pass. weather_feat (B, Dw), grid_feat (B, Dg) -> (B, 1) f32."""
    batch, weather_dim = weather_feat.shape
    grid_dim = grid_feat.shape[1]
    hidden = packed["wwt"].shape[1]
    assert grid_feat.shape[0] == batch
    assert packed["wwt"].shape[0] == weather_dim
    assert packed["wgt"].shape[0] == grid_dim

    min_tile = _min_sublane(weather_feat.dtype, grid_feat.dtype)
    tb, num_steps = _pick_tile(batch, block_b, min_tile)

    # VMEM budget: streamed in/out blocks are lane-padded to 128 lanes and
    # double-buffered; add headroom for f32 intermediates.  Sized so the
    # default tb=8192 stays well under v7x's 64 MiB physical VMEM.
    per_row = 3 * 2 * 128 * 4 + 4 * hidden * 4
    vmem_limit = int(min(max(tb * per_row + (2 << 20), 32 << 20), 112 << 20))

    flops = 2 * batch * hidden * (weather_dim + grid_dim) + 6 * batch * hidden
    weight_bytes = 4 * (hidden * (weather_dim + grid_dim + 4) + 1)
    bytes_accessed = (batch * (weather_dim * weather_feat.dtype.itemsize
                               + grid_dim * grid_feat.dtype.itemsize)
                      + 4 * batch + weight_bytes)

    out = pl.pallas_call(
        _fusion_kernel,
        out_shape=jax.ShapeDtypeStruct((batch, 1), jnp.float32),
        grid_spec=pltpu.PrefetchScalarGridSpec(
            num_scalar_prefetch=0,
            grid=(num_steps,),
            in_specs=[
                pl.BlockSpec((tb, weather_dim), lambda i: (i, 0)),      # streamed
                pl.BlockSpec((tb, grid_dim), lambda i: (i, 0)),         # streamed
                pl.BlockSpec((weather_dim, hidden), lambda i: (0, 0)),  # resident
                pl.BlockSpec((1, hidden), lambda i: (0, 0)),
                pl.BlockSpec((1, hidden), lambda i: (0, 0)),
                pl.BlockSpec((grid_dim, hidden), lambda i: (0, 0)),
                pl.BlockSpec((1, hidden), lambda i: (0, 0)),
                pl.BlockSpec((1, hidden), lambda i: (0, 0)),
                pl.BlockSpec(memory_space=pltpu.MemorySpace.SMEM),      # scalar bias
            ],
            out_specs=pl.BlockSpec((tb, 1), lambda i: (i, 0)),
        ),
        compiler_params=pltpu.CompilerParams(
            dimension_semantics=("parallel",),
            vmem_limit_bytes=vmem_limit,
        ),
        cost_estimate=pl.CostEstimate(flops=flops, transcendentals=0,
                                      bytes_accessed=bytes_accessed),
    )(weather_feat, grid_feat,
      packed["wwt"], packed["bw"], packed["wfw"],
      packed["wgt"], packed["bg"], packed["wfg"], packed["bf"])
    return out


def _reference(weather_feat, grid_feat, params):
    w = jax.nn.relu(weather_feat @ params["ww"].T + params["bw"])
    g = jax.nn.relu(grid_feat @ params["wg"].T + params["bg"])
    combined = jnp.concatenate([w, g], axis=1)
    return combined @ params["wf"].T + params["bf"]


if __name__ == "__main__":
    weather_dim, grid_dim, hidden_dim = 10, 5, 64
    B = 8

    keys = jax.random.split(jax.random.PRNGKey(0), 8)
    # PyTorch nn.Linear layouts: weight (out, in), bias (out,).
    params = {
        "ww": jax.random.normal(keys[0], (hidden_dim, weather_dim), jnp.float32) * 0.1,
        "bw": jax.random.normal(keys[1], (hidden_dim,), jnp.float32) * 0.1,
        "wg": jax.random.normal(keys[2], (hidden_dim, grid_dim), jnp.float32) * 0.1,
        "bg": jax.random.normal(keys[3], (hidden_dim,), jnp.float32) * 0.1,
        "wf": jax.random.normal(keys[4], (1, hidden_dim * 2), jnp.float32) * 0.1,
        "bf": jax.random.normal(keys[5], (1,), jnp.float32) * 0.1,
    }
    packed = prepare_params(params)   # once per parameter set (hoisted)

    weather_feat = jax.random.normal(keys[6], (B, weather_dim), jnp.float32)
    grid_feat = jax.random.normal(keys[7], (B, grid_dim), jnp.float32)

    out = jax.block_until_ready(weather_impact_fusion(weather_feat, grid_feat, packed))
    ref = _reference(weather_feat, grid_feat, params)
    assert out.shape == (B, 1), out.shape
    # Tolerance covers MXU default-precision f32 matmul differences.
    assert jnp.allclose(out, ref, atol=5e-3, rtol=5e-3), (out, ref)

    # Batch that is not a multiple of 8: single full-array block, no padding.
    B2 = 37
    wf2 = jax.random.normal(jax.random.PRNGKey(1), (B2, weather_dim), jnp.float32)
    gf2 = jax.random.normal(jax.random.PRNGKey(2), (B2, grid_dim), jnp.float32)
    out2 = jax.block_until_ready(weather_impact_fusion(wf2, gf2, packed))
    assert out2.shape == (B2, 1), out2.shape
    assert jnp.allclose(out2, _reference(wf2, gf2, params), atol=5e-3, rtol=5e-3)

    # Batch large enough to split into 2 "parallel" grid steps (v7x two-core
    # sharding path) with a masked partial last block.
    B3 = 2500
    wf3 = jax.random.normal(jax.random.PRNGKey(3), (B3, weather_dim), jnp.float32)
    gf3 = jax.random.normal(jax.random.PRNGKey(4), (B3, grid_dim), jnp.float32)
    out3 = jax.block_until_ready(weather_impact_fusion(wf3, gf3, packed))
    assert out3.shape == (B3, 1), out3.shape
    assert jnp.allclose(out3, _reference(wf3, gf3, params), atol=5e-3, rtol=5e-3)

    print("KERNEL_OK")
</pallas_src>

<mosaic_0001>
module attributes {stable_mosaic.version = 11 : i64} {
  func.func @_fusion_kernel(%arg0: i32, %arg1: memref<8x10xf32, #tpu.memory_space<vmem>>, %arg2: memref<8x5xf32, #tpu.memory_space<vmem>>, %arg3: memref<10x64xf32, #tpu.memory_space<vmem>>, %arg4: memref<1x64xf32, #tpu.memory_space<vmem>>, %arg5: memref<1x64xf32, #tpu.memory_space<vmem>>, %arg6: memref<5x64xf32, #tpu.memory_space<vmem>>, %arg7: memref<1x64xf32, #tpu.memory_space<vmem>>, %arg8: memref<1x64xf32, #tpu.memory_space<vmem>>, %arg9: memref<1xf32, #tpu.memory_space<smem>>, %arg10: memref<8x1xf32, #tpu.memory_space<vmem>>) attributes {dimension_semantics = [#tpu.dimension_semantics<parallel>], iteration_bounds = array<i64: 1>, scalar_prefetch = 0 : i64, scratch_operands = 0 : i64, tpu.core_type = #tpu.core_type<tc>, window_params = [{transform_indices = @transform_0, window_bounds = array<i64: 8, 10>}, {transform_indices = @transform_1, window_bounds = array<i64: 8, 5>}, {pipeline_mode = #tpu.pipeline_mode<synchronous>, transform_indices = @transform_2, window_bounds = array<i64: 10, 64>}, {pipeline_mode = #tpu.pipeline_mode<synchronous>, transform_indices = @transform_3, window_bounds = array<i64: 1, 64>}, {pipeline_mode = #tpu.pipeline_mode<synchronous>, transform_indices = @transform_4, window_bounds = array<i64: 1, 64>}, {pipeline_mode = #tpu.pipeline_mode<synchronous>, transform_indices = @transform_5, window_bounds = array<i64: 5, 64>}, {pipeline_mode = #tpu.pipeline_mode<synchronous>, transform_indices = @transform_6, window_bounds = array<i64: 1, 64>}, {pipeline_mode = #tpu.pipeline_mode<synchronous>, transform_indices = @transform_7, window_bounds = array<i64: 1, 64>}, {transform_indices = @transform_8, window_bounds = array<i64: 1>}, {transform_indices = @transform_9, window_bounds = array<i64: 8, 1>}]} {
    %c0 = arith.constant 0 : index
    %c0_0 = arith.constant 0 : index
    %0 = vector.load %arg1[%c0, %c0_0] : memref<8x10xf32, #tpu.memory_space<vmem>>, vector<8x10xf32>
    %c0_1 = arith.constant 0 : index
    %c0_2 = arith.constant 0 : index
    %1 = vector.load %arg2[%c0_1, %c0_2] : memref<8x5xf32, #tpu.memory_space<vmem>>, vector<8x5xf32>
    %c0_3 = arith.constant 0 : index
    %c0_4 = arith.constant 0 : index
    %2 = vector.load %arg3[%c0_3, %c0_4] : memref<10x64xf32, #tpu.memory_space<vmem>>, vector<10x64xf32>
    %cst = arith.constant dense<0.000000e+00> : vector<8x64xf32>
    %3 = tpu.matmul %0, %2, %cst {dimension_numbers = #tpu.dot_dimension_numbers<[1], [0], [0], [1], [0, 0, 1, 1], [], []>} : vector<8x10xf32>, vector<10x64xf32>, vector<8x64xf32> -> vector<8x64xf32>
    %c0_5 = arith.constant 0 : index
    %c0_6 = arith.constant 0 : index
    %4 = vector.load %arg4[%c0_5, %c0_6] : memref<1x64xf32, #tpu.memory_space<vmem>>, vector<1x64xf32>
    %5 = vector.broadcast %4 : vector<1x64xf32> to vector<8x64xf32>
    %6 = arith.addf %3, %5 : vector<8x64xf32>
    %cst_7 = arith.constant 0.000000e+00 : f32
    %7 = vector.broadcast %cst_7 : f32 to vector<8x64xf32>
    %8 = arith.maximumf %6, %7 : vector<8x64xf32>
    %c0_8 = arith.constant 0 : index
    %c0_9 = arith.constant 0 : index
    %9 = vector.load %arg6[%c0_8, %c0_9] : memref<5x64xf32, #tpu.memory_space<vmem>>, vector<5x64xf32>
    %cst_10 = arith.constant dense<0.000000e+00> : vector<8x64xf32>
    %10 = tpu.matmul %1, %9, %cst_10 {dimension_numbers = #tpu.dot_dimension_numbers<[1], [0], [0], [1], [0, 0, 1, 1], [], []>} : vector<8x5xf32>, vector<5x64xf32>, vector<8x64xf32> -> vector<8x64xf32>
    %c0_11 = arith.constant 0 : index
    %c0_12 = arith.constant 0 : index
    %11 = vector.load %arg7[%c0_11, %c0_12] : memref<1x64xf32, #tpu.memory_space<vmem>>, vector<1x64xf32>
    %12 = vector.broadcast %11 : vector<1x64xf32> to vector<8x64xf32>
    %13 = arith.addf %10, %12 : vector<8x64xf32>
    %cst_13 = arith.constant 0.000000e+00 : f32
    %14 = vector.broadcast %cst_13 : f32 to vector<8x64xf32>
    %15 = arith.maximumf %13, %14 : vector<8x64xf32>
    %c0_14 = arith.constant 0 : index
    %c0_15 = arith.constant 0 : index
    %16 = vector.load %arg5[%c0_14, %c0_15] : memref<1x64xf32, #tpu.memory_space<vmem>>, vector<1x64xf32>
    %17 = vector.broadcast %16 : vector<1x64xf32> to vector<8x64xf32>
    %18 = arith.mulf %8, %17 : vector<8x64xf32>
    %c0_16 = arith.constant 0 : index
    %c0_17 = arith.constant 0 : index
    %19 = vector.load %arg8[%c0_16, %c0_17] : memref<1x64xf32, #tpu.memory_space<vmem>>, vector<1x64xf32>
    %20 = vector.broadcast %19 : vector<1x64xf32> to vector<8x64xf32>
    %21 = arith.mulf %15, %20 : vector<8x64xf32>
    %22 = arith.addf %18, %21 : vector<8x64xf32>
    %cst_18 = arith.constant dense<0.000000e+00> : vector<8xf32>
    %23 = vector.multi_reduction <add>, %22, %cst_18 [1] : vector<8x64xf32> to vector<8xf32>
    %24 = vector.shape_cast %23 : vector<8xf32> to vector<8x1xf32>
    %c0_19 = arith.constant 0 : index
    %25 = memref.load %arg9[%c0_19] : memref<1xf32, #tpu.memory_space<smem>>
    %26 = vector.broadcast %25 : f32 to vector<8x1xf32>
    %27 = arith.addf %24, %26 : vector<8x1xf32>
    %c0_20 = arith.constant 0 : index
    %c0_21 = arith.constant 0 : index
    %28 = vector.load %arg10[%c0_20, %c0_21] : memref<8x1xf32, #tpu.memory_space<vmem>>, vector<8x1xf32>
    tpu.vector_store %arg10[%c0_20, %c0_21], %27 {strides = array<i32>} : memref<8x1xf32, #tpu.memory_space<vmem>>, vector<8x1xf32>,
    return
  }
  func.func @transform_0(%arg0: i32) -> (i32, i32) {
    %c0_i32 = arith.constant 0 : i32
    %c0_i32_0 = arith.constant 0 : i32
    return %arg0, %c0_i32 : i32, i32
  }
  func.func @transform_1(%arg0: i32) -> (i32, i32) {
    %c0_i32 = arith.constant 0 : i32
    %c0_i32_0 = arith.constant 0 : i32
    return %arg0, %c0_i32 : i32, i32
  }
  func.func @transform_2(%arg0: i32) -> (i32, i32) {
    %c0_i32 = arith.constant 0 : i32
    %c0_i32_0 = arith.constant 0 : i32
    %c0_i32_1 = arith.constant 0 : i32
    return %c0_i32, %c0_i32_0 : i32, i32
  }
  func.func @transform_3(%arg0: i32) -> (i32, i32) {
    %c0_i32 = arith.constant 0 : i32
    %c0_i32_0 = arith.constant 0 : i32
    %c0_i32_1 = arith.constant 0 : i32
    return %c0_i32, %c0_i32_0 : i32, i32
  }
  func.func @transform_4(%arg0: i32) -> (i32, i32) {
    %c0_i32 = arith.constant 0 : i32
    %c0_i32_0 = arith.constant 0 : i32
    %c0_i32_1 = arith.constant 0 : i32
    return %c0_i32, %c0_i32_0 : i32, i32
  }
  func.func @transform_5(%arg0: i32) -> (i32, i32) {
    %c0_i32 = arith.constant 0 : i32
    %c0_i32_0 = arith.constant 0 : i32
    %c0_i32_1 = arith.constant 0 : i32
    return %c0_i32, %c0_i32_0 : i32, i32
  }
  func.func @transform_6(%arg0: i32) -> (i32, i32) {
    %c0_i32 = arith.constant 0 : i32
    %c0_i32_0 = arith.constant 0 : i32
    %c0_i32_1 = arith.constant 0 : i32
    return %c0_i32, %c0_i32_0 : i32, i32
  }
  func.func @transform_7(%arg0: i32) -> (i32, i32) {
    %c0_i32 = arith.constant 0 : i32
    %c0_i32_0 = arith.constant 0 : i32
    %c0_i32_1 = arith.constant 0 : i32
    return %c0_i32, %c0_i32_0 : i32, i32
  }
  func.func @transform_8(%arg0: i32) -> i32 {
    %c0_i32 = arith.constant 0 : i32
    %c0_i32_0 = arith.constant 0 : i32
    return %c0_i32 : i32
  }
  func.func @transform_9(%arg0: i32) -> (i32, i32) {
    %c0_i32 = arith.constant 0 : i32
    %c0_i32_0 = arith.constant 0 : i32
    return %arg0, %c0_i32 : i32, i32
  }
}

</mosaic_0001>

<llo_original>
// kernel: tpu_custom_call.1
$region0: #{tpu_custom_call.1}
  #allocation0 [shape = 'u32[]', space=smem, size = 0x4, offset = 0x4, fixed_abs, tag = 'smem constant byte address 0x4 - core index']
  #allocation1 [shape = 'u32[72,128]{1,0:T(1,128)}', space=vmem, size = 0x9000, scoped, tag = 'internal scratch']
  #allocation2 [shape = 'f32[1]{0:T(128)S(6)}', space=smem, size = 0x200, scoped, tag = 'scoped memory for tpu_custom_call.1']
  %s0 = inlined_call_operand.hbm [shape: f32[8,10], index: 0, kind: input, shape index: {}]
  %s1 = inlined_call_operand.hbm [shape: f32[8,5], index: 1, kind: input, shape index: {}]
  %s2 = inlined_call_operand.hbm [shape: f32[10,64], index: 2, kind: input, shape index: {}]
  %s3 = inlined_call_operand.vmem [shape: f32[1,64], index: 3, kind: input, shape index: {}]
  %s4 = inlined_call_operand.vmem [shape: f32[1,64], index: 4, kind: input, shape index: {}]
  %s5 = inlined_call_operand.hbm [shape: f32[5,64], index: 5, kind: input, shape index: {}]
  %s6 = inlined_call_operand.vmem [shape: f32[1,64], index: 6, kind: input, shape index: {}]
  %s7 = inlined_call_operand.vmem [shape: f32[1,64], index: 7, kind: input, shape index: {}]
  %s8 = inlined_call_operand.<no memory space> [shape: f32[1], index: 8, kind: input, shape index: {}]
  %s9 = inlined_call_operand.vmem [shape: f32[8,1], index: 9, kind: output, shape index: {}]
  %s10 = sld [smem:[#allocation0]]
  $region62: #{tpu_custom_call.1} parent=0
    _
  %s12 = ssub.s32 1, %s10
  %s13 = scalar_select 0, %s12, %s10
  %14 = sst [smem:[#allocation2]] %s8
  $region1: #{tpu_custom_call.1} parent=0
    #allocation3 [shape = 'u8[4096]{0}', space=vmem, size = 0x1000, scoped, tag = 'input window, operand 0, single buffered']
    #allocation4 [shape = 's32[1]{0}', space=sflag, size = 0x4, scoped, tag = 'scoped memory for tpu_custom_call.1']
    #allocation5 [shape = 'u8[4096]{0}', space=vmem, size = 0x1000, scoped, tag = 'input window, operand 1, single buffered']
    #allocation6 [shape = 's32[1]{0}', space=sflag, size = 0x4, scoped, tag = 'scoped memory for tpu_custom_call.1']
    #allocation7 [shape = 'u8[8192]{0}', space=vmem, size = 0x2000, scoped, tag = 'input window, operand 2, single buffered']
    #allocation8 [shape = 'u8[4096]{0}', space=vmem, size = 0x1000, scoped, tag = 'input window, operand 5, single buffered']
    #allocation9 [shape = 's32[1]{0}', space=sflag, size = 0x4, scoped, tag = 'scoped memory for tpu_custom_call.1']
    %15 = vsyncpa [#allocation4], 0
    %16 = vsyncpa [#allocation6], 0
    %17 = vsyncpa [#allocation9], 0
    // Predicated region
    $region2: #{tpu_custom_call.1} parent=1 // pred_check
      _
    $region3: #{tpu_custom_call.1} parent=1 // pred_check_branch
      %19 = sbr.rel (0) target = $region5
    $region4: #{tpu_custom_call.1} parent=1 // pred_region
      %21 = vsyncadd [#allocation4], 0
      %s23 = sshll.u32 %s0, 4
      %s24 = int_to_ptr.hbm [resolvable:$true] %s23
      %s25 = sshll.u32 [#allocation3], 4
      %s26 = int_to_ptr.vmem [resolvable:$true] %s25
      %28 = dma.hbm_to_vmem [thread:$0]  %s24, 128, %s26, [#allocation4]
    $region5: #{tpu_custom_call.1} parent=1 // pred_fallthru
      _
    // Predicated region
    $region6: #{tpu_custom_call.1} parent=1 // pred_check
      _
    $region7: #{tpu_custom_call.1} parent=1 // pred_check_branch
      %30 = sbr.rel (0) target = $region9
    $region8: #{tpu_custom_call.1} parent=1 // pred_region
      %32 = vsyncadd [#allocation6], 0
      %s34 = sshll.u32 %s1, 4
      %s35 = int_to_ptr.hbm [resolvable:$true] %s34
      %s36 = sshll.u32 [#allocation5], 4
      %s37 = int_to_ptr.vmem [resolvable:$true] %s36
      %39 = dma.hbm_to_vmem [thread:$0]  %s35, 128, %s37, [#allocation6]
    $region9: #{tpu_custom_call.1} parent=1 // pred_fallthru
      _
    // Predicated region
    $region10: #{tpu_custom_call.1} parent=1 // pred_check
      _
    $region11: #{tpu_custom_call.1} parent=1 // pred_check_branch
      %41 = sbr.rel (0) target = $region13
    $region12: #{tpu_custom_call.1} parent=1 // pred_region
      %43 = vsyncadd [#allocation6], 0
      %s44 = sshll.u32 %s2, 4
      %s45 = int_to_ptr.hbm [resolvable:$true] %s44
      %s46 = sshll.u32 [#allocation7], 4
      %s47 = int_to_ptr.vmem [resolvable:$true] %s46
      %52 = dma.hbm_to_vmem [thread:$0]  %s45, 256, %s47, [#allocation6], 128, 128, 8
    $region13: #{tpu_custom_call.1} parent=1 // pred_fallthru
      _
    // Predicated region
    $region14: #{tpu_custom_call.1} parent=1 // pred_check
      _
    $region15: #{tpu_custom_call.1} parent=1 // pred_check_branch
      %54 = sbr.rel (0) target = $region17
    $region16: #{tpu_custom_call.1} parent=1 // pred_region
      _
    $region17: #{tpu_custom_call.1} parent=1 // pred_fallthru
      _
    // Predicated region
    $region18: #{tpu_custom_call.1} parent=1 // pred_check
      _
    $region19: #{tpu_custom_call.1} parent=1 // pred_check_branch
      %56 = sbr.rel (0) target = $region21
    $region20: #{tpu_custom_call.1} parent=1 // pred_region
      _
    $region21: #{tpu_custom_call.1} parent=1 // pred_fallthru
      _
    // Predicated region
    $region22: #{tpu_custom_call.1} parent=1 // pred_check
      _
    $region23: #{tpu_custom_call.1} parent=1 // pred_check_branch
      %58 = sbr.rel (0) target = $region25
    $region24: #{tpu_custom_call.1} parent=1 // pred_region
      %60 = vsyncadd [#allocation9], 0
      %s62 = sshll.u32 %s5, 4
      %s63 = int_to_ptr.hbm [resolvable:$true] %s62
      %s64 = sshll.u32 [#allocation8], 4
      %s65 = int_to_ptr.vmem [resolvable:$true] %s64
      %67 = dma.hbm_to_vmem [thread:$0]  %s63, 128, %s65, [#allocation9]
    $region25: #{tpu_custom_call.1} parent=1 // pred_fallthru
      _
    // Predicated region
    $region26: #{tpu_custom_call.1} parent=1 // pred_check
      _
    $region27: #{tpu_custom_call.1} parent=1 // pred_check_branch
      %69 = sbr.rel (0) target = $region29
    $region28: #{tpu_custom_call.1} parent=1 // pred_region
      _
    $region29: #{tpu_custom_call.1} parent=1 // pred_fallthru
      _
    // Predicated region
    $region30: #{tpu_custom_call.1} parent=1 // pred_check
      _
    $region31: #{tpu_custom_call.1} parent=1 // pred_check_branch
      %71 = sbr.rel (0) target = $region33
    $region32: #{tpu_custom_call.1} parent=1 // pred_region
      _
    $region33: #{tpu_custom_call.1} parent=1 // pred_fallthru
      _
    // Predicated region
    $region34: #{tpu_custom_call.1} parent=1 // pred_check
      _
    $region35: #{tpu_custom_call.1} parent=1 // pred_check_branch
      %73 = sbr.rel (0) target = $region37
    $region36: #{tpu_custom_call.1} parent=1 // pred_region
      _
    $region37: #{tpu_custom_call.1} parent=1 // pred_fallthru
      _
    // Predicated region
    $region38: #{tpu_custom_call.1} parent=1 // pred_check
      _
    $region39: #{tpu_custom_call.1} parent=1 // pred_check_branch
      %75 = sbr.rel (0) target = $region41
    $region40: #{tpu_custom_call.1} parent=1 // pred_region
      %77 = dma.done [#allocation4], 128
    $region41: #{tpu_custom_call.1} parent=1 // pred_fallthru
      _
    // Predicated region
    $region42: #{tpu_custom_call.1} parent=1 // pred_check
      _
    $region43: #{tpu_custom_call.1} parent=1 // pred_check_branch
      %79 = sbr.rel (0) target = $region45
    $region44: #{tpu_custom_call.1} parent=1 // pred_region
      %81 = dma.done [#allocation6], 128
    $region45: #{tpu_custom_call.1} parent=1 // pred_fallthru
      _
    // Predicated region
    $region46: #{tpu_custom_call.1} parent=1 // pred_check
      _
    $region47: #{tpu_custom_call.1} parent=1 // pred_check_branch
      %83 = sbr.rel (0) target = $region49
    $region48: #{tpu_custom_call.1} parent=1 // pred_region
      %85 = dma.done [#allocation6], 256
    $region49: #{tpu_custom_call.1} parent=1 // pred_fallthru
      _
    // Predicated region
    $region50: #{tpu_custom_call.1} parent=1 // pred_check
      _
    $region51: #{tpu_custom_call.1} parent=1 // pred_check_branch
      %87 = sbr.rel (0) target = $region53
    $region52: #{tpu_custom_call.1} parent=1 // pred_region
      %89 = dma.done [#allocation9], 128
    $region53: #{tpu_custom_call.1} parent=1 // pred_fallthru
      _
    %v90 = vld [vmem:[#allocation3] sm:$0xff]
    %v91 = vld [vmem:[#allocation5] sm:$0xff]
    %v92 = vld [vmem:[#allocation7] sm:$0xff]
    %v93 = vld [vmem:[#allocation7 + $0x8] sm:$0x3]
    %v94 = vld [vmem:[%s3] sm:$0x1]
    %v96 = vperm.slane %v94, 0
    %vm98 = vcmask 80896
    %v100 = vsel %vm98, %v90, 0
    %vm102 = vcmask 1041408
    %v104 = vsel %vm102, %v93, 0
    %106 = vmatpush.msra.mxu0 0.0
    %107 = vmatpush.msra.mxu0 0.0
    %108 = vmatpush.msra.mxu0 0.0
    %109 = vmatpush.msra.mxu0 0.0
    %110 = vmatpush.msra.mxu0 0.0
    %111 = vmatpush.msra.mxu0 0.0
    %112 = vmatpush.msra.mxu0 0.0
    %113 = vmatpush.msra.mxu0 0.0
    %114 = vmatpush.msra.mxu0 0.0
    %115 = vmatpush.msra.mxu0 0.0
    %116 = vmatpush.msra.mxu0 0.0
    %117 = vmatpush.msra.mxu0 0.0
    %118 = vmatpush.msra.mxu0 0.0
    %119 = vmatpush.msra.mxu0 0.0
    %120 = vmatpush.msra.mxu0 %v104
    %121 = vmatpush.msra.mxu0 %v92
    %122 = vmatmul.f32.gmra.mxu0 %v100
    %v123 = vpop.f32.mrf.mxu0
    %v124 = vadd.f32 %v96, %v123
    %125 = vdwg.mxu0
    %v126 = vmax.f32 %v124, 0.0
    %v127 = vld [vmem:[#allocation8] sm:$0x1f]
    %v128 = vld [vmem:[%s6] sm:$0x1]
    %v130 = vperm.slane %v128, 0
    %vm132 = vcmask 39936
    %v134 = vsel %vm132, %v91, 0
    %vm136 = vcmask 1044480
    %v138 = vsel %vm136, %v127, 0
    %140 = vmatpush.msra.mxu0 0.0
    %141 = vmatpush.msra.mxu0 0.0
    %142 = vmatpush.msra.mxu0 0.0
    %143 = vmatpush.msra.mxu0 0.0
    %144 = vmatpush.msra.mxu0 0.0
    %145 = vmatpush.msra.mxu0 0.0
    %146 = vmatpush.msra.mxu0 0.0
    %147 = vmatpush.msra.mxu0 0.0
    %148 = vmatpush.msra.mxu0 0.0
    %149 = vmatpush.msra.mxu0 0.0
    %150 = vmatpush.msra.mxu0 0.0
    %151 = vmatpush.msra.mxu0 0.0
    %152 = vmatpush.msra.mxu0 0.0
    %153 = vmatpush.msra.mxu0 0.0
    %154 = vmatpush.msra.mxu0 0.0
    %155 = vmatpush.msra.mxu0 %v138
    %156 = vmatmul.f32.gmra.mxu0 %v134
    %v157 = vpop.f32.mrf.mxu0
    %v158 = vadd.f32 %v130, %v157
    %159 = vdwg.mxu0
    %v160 = vmax.f32 %v158, 0.0
    %v161 = vld [vmem:[%s4] sm:$0x1]
    %v163 = vperm.slane %v161, 0
    %v165 = vmul.f32 %v126, %v163
    %v166 = vld [vmem:[%s7] sm:$0x1]
    %v168 = vperm.slane %v166, 0
    %v170 = vmul.f32 %v160, %v168
    %v171 = vadd.f32 %v165, %v170
    %vm172 = vcmask 523264
    %v173 = vsel %vm172, %v171, 0.0
    %174 = vadd.xlane.f32.xlu0 %v173
    %v175 = vpop.xlane.xlu0 %174
    %s176 = sld [smem:[#allocation2]]
    %v177 = vstv %s176
    %v178 = vadd.f32 %v175, %v177
    %vm179 = vcmask 7168
    %180 = vst.msk [vmem:[%s9] sm:$0xff] %vm179, %v178
    // Predicated region
    $region54: #{tpu_custom_call.1} parent=1 // pred_check
      _
    $region55: #{tpu_custom_call.1} parent=1 // pred_check_branch
      %182 = sbr.rel (0) target = $region57
    $region56: #{tpu_custom_call.1} parent=1 // pred_region
      _
    $region57: #{tpu_custom_call.1} parent=1 // pred_fallthru
      _
    // Predicated region
    $region58: #{tpu_custom_call.1} parent=1 // pred_check
      _
    $region59: #{tpu_custom_call.1} parent=1 // pred_check_branch
      %184 = sbr.rel (0) target = $region61
    $region60: #{tpu_custom_call.1} parent=1 // pred_region
      _
    $region61: #{tpu_custom_call.1} parent=1 // pred_fallthru
      _
    %185 = vsyncpa [#allocation4], 1
    %186 = vsyncpa [#allocation6], 1
    %187 = vsyncpa [#allocation9], 1

</llo_original>
